<compile_context>
chip_gen: v5e
topology: v5e:2x2
jax: 0.10.0
libtpu: 0.0.40
codegen_flags: <defaults>
</compile_context>

<pallas_src>
import math

import jax
import jax.numpy as jnp
from jax.experimental import pallas as pl
from jax.experimental.pallas import tpu as pltpu


def _round_up(x, m):
    return -(-x // m) * m


# ---------------------------------------------------------------------------
# Kernel
# ---------------------------------------------------------------------------
def mlp_kernel(x_ref, w_in_ref, w_out_ref, o_ref, acc_ref):
    """Grid axis 0 tiles batch ("parallel"); axis 1 tiles d_mlp ("arbitrary":
    the reduction axis of the second matmul — ReLU is elementwise over d_mlp,
    so chunking it is exact).  All streamed operands arrive as bf16."""
    k = pl.program_id(1)

    @pl.when(k == 0)
    def _init():
        acc_ref[...] = jnp.zeros_like(acc_ref)

    # bf16 operands feed the MXU at full rate; accumulate in f32.
    mid = jnp.dot(x_ref[...], w_in_ref[...], preferred_element_type=jnp.float32)
    mid = jnp.maximum(mid, 0.0)  # ReLU in f32 (v5e has no bf16 VPU; minor elsewhere)
    acc_ref[...] += jnp.dot(mid.astype(jnp.bfloat16), w_out_ref[...],
                            preferred_element_type=jnp.float32)

    @pl.when(k == pl.num_programs(1) - 1)
    def _finalize():
        o_ref[...] = acc_ref[...].astype(o_ref.dtype)


# ---------------------------------------------------------------------------
# Tiling / VMEM budgeting
# ---------------------------------------------------------------------------
def _vmem_budget_bytes():
    """Usable VMEM budget with headroom below the physical capacity
    (~48 MiB on v7x's 64 MiB, ~96 MiB on v5e/v6e's 128 MiB)."""
    try:
        cap = pltpu.get_tpu_info().vmem_capacity_bytes
    except Exception:  # pragma: no cover - conservative fallback
        cap = 64 * 1024 * 1024
    return int(cap * 0.75)


def _footprint_bytes(tb, tk, nf_p, out_itemsize):
    bf16 = 2
    return (2 * tb * nf_p * bf16            # x tiles (double buffered, bf16)
            + 2 * tb * nf_p * out_itemsize  # out tiles (double buffered)
            + tb * nf_p * 4                 # f32 accumulator scratch
            + 2 * nf_p * tk * bf16          # w_in tiles (double buffered)
            + 2 * tk * nf_p * bf16          # w_out tiles (double buffered)
            + tb * tk * 4                   # f32 mid temporary
            + tb * tk * bf16)               # bf16 mid (downcast for 2nd matmul)


def _pick_tiles(batch, nf_p, dm_p, out_itemsize, budget):
    # Batch tile: up to 512 rows (weights are re-streamed once per batch tile,
    # so bigger tiles raise arithmetic intensity).  For small batches, split
    # into >=2 tiles so the "parallel" axis can shard over v7x's two TCs.
    pb0 = _round_up(batch, 8)
    if pb0 > 512:
        tb0 = 512
    elif pb0 >= 16:
        tb0 = _round_up(pb0 // 2, 8)
    else:
        tb0 = pb0

    tb_cands = []
    tb = tb0
    while tb >= 8:
        tb_cands.append(tb)
        tb = _round_up(tb // 2, 8) if tb > 8 else 0

    # tile_k: largest 256-multiple that divides the padded d_mlp and fits VMEM.
    tk_cands = [c for c in (2048, 1024, 512, 256) if dm_p % c == 0]

    for tb in tb_cands:
        for tk in tk_cands:
            if 1.5 * _footprint_bytes(tb, tk, nf_p, out_itemsize) <= budget:
                return tb, tk
    return tb_cands[-1], tk_cands[-1]  # best effort for enormous n_features


# ---------------------------------------------------------------------------
# Wrapper
# ---------------------------------------------------------------------------
def _pad_cast_bf16(a, rows, cols):
    a = a.astype(jnp.bfloat16)
    r, c = a.shape
    if (r, c) != (rows, cols):
        a = jnp.pad(a, ((0, rows - r), (0, cols - c)))
    return a


def mlp_forward(x, w_in, w_out, *, tile_b=None, tile_k=None):
    """Pallas MLP forward: relu(x @ w_in) @ w_out, tiled over (batch, d_mlp)."""
    batch, n_features = x.shape
    nf2, d_mlp = w_in.shape
    assert nf2 == n_features and w_out.shape == (d_mlp, n_features)

    out_dtype = x.dtype
    out_itemsize = jnp.dtype(out_dtype).itemsize

    # Lane-align n_features (last dim of x / out / accumulator) and 256-align
    # d_mlp (v6e/v7x MXU tile).  Zero padding is exact: relu(0) @ 0 == 0.
    nf_p = _round_up(n_features, 128)
    dm_p = _round_up(d_mlp, 256)

    budget = _vmem_budget_bytes()
    tb_auto, tk_auto = _pick_tiles(batch, nf_p, dm_p, out_itemsize, budget)
    tile_b = tile_b or tb_auto
    tile_k = tile_k or tk_auto
    assert dm_p % tile_k == 0, "padded d_mlp must be divisible by tile_k"

    padded_batch = _round_up(batch, tile_b)

    # Pre-cast to bf16 and zero-pad once in the wrapper (halves HBM DMA bytes,
    # removes per-step casts inside the kernel).
    x_p = _pad_cast_bf16(x, padded_batch, nf_p)
    w_in_p = _pad_cast_bf16(w_in, nf_p, dm_p)
    w_out_p = _pad_cast_bf16(w_out, dm_p, nf_p)

    grid = (padded_batch // tile_b, dm_p // tile_k)
    n_batch_tiles = grid[0]

    cost = pl.CostEstimate(
        flops=4 * padded_batch * nf_p * dm_p,  # two matmuls, 2*M*N*K each
        transcendentals=0,
        bytes_accessed=(x_p.size * 2
                        # weights are re-streamed once per batch tile
                        + n_batch_tiles * (w_in_p.size + w_out_p.size) * 2
                        + padded_batch * nf_p * out_itemsize),
    )

    out = pl.pallas_call(
        mlp_kernel,
        out_shape=jax.ShapeDtypeStruct((padded_batch, nf_p), out_dtype),
        grid_spec=pltpu.PrefetchScalarGridSpec(
            num_scalar_prefetch=0,
            grid=grid,
            in_specs=[
                pl.BlockSpec((tile_b, nf_p), lambda i, k: (i, 0)),
                pl.BlockSpec((nf_p, tile_k), lambda i, k: (0, k)),
                pl.BlockSpec((tile_k, nf_p), lambda i, k: (k, 0)),
            ],
            out_specs=pl.BlockSpec((tile_b, nf_p), lambda i, k: (i, 0)),
            scratch_shapes=[pltpu.VMEM((tile_b, nf_p), jnp.float32)],
        ),
        compiler_params=pltpu.CompilerParams(
            dimension_semantics=("parallel", "arbitrary"),
            vmem_limit_bytes=budget,
        ),
        cost_estimate=cost,
    )(x_p, w_in_p, w_out_p)

    if padded_batch != batch or nf_p != n_features:
        out = out[:batch, :n_features]
    return out


# ---------------------------------------------------------------------------
# References / init
# ---------------------------------------------------------------------------
def kaiming_uniform(key, shape):
    """Replicates torch.nn.init.kaiming_uniform_ defaults (a=0, fan_in mode,
    gain=sqrt(2)).  For a 2-D tensor, PyTorch's fan_in = shape[1]."""
    fan_in = shape[1]
    bound = math.sqrt(6.0 / fan_in)
    return jax.random.uniform(key, shape, jnp.float32, -bound, bound)


def mlp_reference_f32(x, w_in, w_out):
    return jnp.maximum(x @ w_in, 0.0) @ w_out


def mlp_reference_bf16(x, w_in, w_out):
    """Same math as the kernel: bf16 operands, f32 accumulation."""
    mid = jnp.dot(x.astype(jnp.bfloat16), w_in.astype(jnp.bfloat16),
                  preferred_element_type=jnp.float32)
    mid = jnp.maximum(mid, 0.0)
    return jnp.dot(mid.astype(jnp.bfloat16), w_out.astype(jnp.bfloat16),
                   preferred_element_type=jnp.float32)


if __name__ == "__main__":
    # Small shapes consistent with MLP(n_features, d_mlp): x is [batch, n_features]
    batch, n_features, d_mlp = 8, 16, 32

    key = jax.random.PRNGKey(0)
    k_x, k_win, k_wout = jax.random.split(key, 3)

    x = jax.random.normal(k_x, (batch, n_features), jnp.float32)
    w_in = kaiming_uniform(k_win, (n_features, d_mlp))
    w_out = kaiming_uniform(k_wout, (d_mlp, n_features))

    out = jax.block_until_ready(mlp_forward(x, w_in, w_out))
    assert out.shape == (batch, n_features)

    # Tight check vs. a reference that uses the same bf16-operand / f32-accum math.
    ref_bf16 = mlp_reference_bf16(x, w_in, w_out)
    assert jnp.allclose(out, ref_bf16, atol=2e-4, rtol=2e-4), "mismatch vs bf16 reference"

    # Sanity check vs. the full-f32 PyTorch-equivalent reference (bf16 rounding tolerance).
    ref_f32 = mlp_reference_f32(x, w_in, w_out)
    assert jnp.allclose(out, ref_f32, atol=1e-1, rtol=1e-1), "mismatch vs f32 reference"

    print("KERNEL_OK")
</pallas_src>

<mosaic_0001>
module attributes {stable_mosaic.version = 11 : i64} {
  func.func @mlp_kernel(%arg0: i32, %arg1: i32, %arg2: memref<8x128xbf16, #tpu.memory_space<vmem>>, %arg3: memref<128x256xbf16, #tpu.memory_space<vmem>>, %arg4: memref<256x128xbf16, #tpu.memory_space<vmem>>, %arg5: memref<8x128xf32, #tpu.memory_space<vmem>>, %arg6: memref<8x128xf32, #tpu.memory_space<vmem>>) attributes {dimension_semantics = [#tpu.dimension_semantics<parallel>, #tpu.dimension_semantics<arbitrary>], iteration_bounds = array<i64: 1, 1>, scalar_prefetch = 0 : i64, scratch_operands = 1 : i64, tpu.core_type = #tpu.core_type<tc>, window_params = [{transform_indices = @transform_0, window_bounds = array<i64: 8, 128>}, {transform_indices = @transform_1, window_bounds = array<i64: 128, 256>}, {transform_indices = @transform_2, window_bounds = array<i64: 256, 128>}, {transform_indices = @transform_3, window_bounds = array<i64: 8, 128>}]} {
    %c0_i32 = arith.constant 0 : i32
    %0 = arith.cmpi eq, %arg1, %c0_i32 : i32
    %1 = arith.extui %0 : i1 to i32
    %c0_i32_0 = arith.constant 0 : i32
    %2 = arith.cmpi ne, %1, %c0_i32_0 : i32
    scf.if %2 {
      %cst_14 = arith.constant 0.000000e+00 : f32
      %17 = vector.broadcast %cst_14 : f32 to vector<8x128xf32>
      %c0_15 = arith.constant 0 : index
      %c0_16 = arith.constant 0 : index
      %18 = vector.load %arg6[%c0_15, %c0_16] : memref<8x128xf32, #tpu.memory_space<vmem>>, vector<8x128xf32>
      tpu.vector_store %arg6[%c0_15, %c0_16], %17 {strides = array<i32>} : memref<8x128xf32, #tpu.memory_space<vmem>>, vector<8x128xf32>,
    } else {
    }
    %c0 = arith.constant 0 : index
    %c0_1 = arith.constant 0 : index
    %3 = vector.load %arg2[%c0, %c0_1] : memref<8x128xbf16, #tpu.memory_space<vmem>>, vector<8x128xbf16>
    %c0_2 = arith.constant 0 : index
    %c0_3 = arith.constant 0 : index
    %4 = vector.load %arg3[%c0_2, %c0_3] : memref<128x256xbf16, #tpu.memory_space<vmem>>, vector<128x256xbf16>
    %cst = arith.constant dense<0.000000e+00> : vector<8x256xf32>
    %5 = tpu.matmul %3, %4, %cst {dimension_numbers = #tpu.dot_dimension_numbers<[1], [0], [0], [1], [0, 0, 1, 1], [], []>} : vector<8x128xbf16>, vector<128x256xbf16>, vector<8x256xf32> -> vector<8x256xf32>
    %cst_4 = arith.constant 0.000000e+00 : f32
    %6 = vector.broadcast %cst_4 : f32 to vector<8x256xf32>
    %7 = arith.maximumf %5, %6 : vector<8x256xf32>
    %c0_5 = arith.constant 0 : index
    %c0_6 = arith.constant 0 : index
    %8 = vector.load %arg6[%c0_5, %c0_6] : memref<8x128xf32, #tpu.memory_space<vmem>>, vector<8x128xf32>
    %9 = arith.truncf %7 : vector<8x256xf32> to vector<8x256xbf16>
    %c0_7 = arith.constant 0 : index
    %c0_8 = arith.constant 0 : index
    %10 = vector.load %arg4[%c0_7, %c0_8] : memref<256x128xbf16, #tpu.memory_space<vmem>>, vector<256x128xbf16>
    %cst_9 = arith.constant dense<0.000000e+00> : vector<8x128xf32>
    %11 = tpu.matmul %9, %10, %cst_9 {dimension_numbers = #tpu.dot_dimension_numbers<[1], [0], [0], [1], [0, 0, 1, 1], [], []>} : vector<8x256xbf16>, vector<256x128xbf16>, vector<8x128xf32> -> vector<8x128xf32>
    %12 = arith.addf %8, %11 : vector<8x128xf32>
    %c0_10 = arith.constant 0 : index
    %c0_11 = arith.constant 0 : index
    %13 = vector.load %arg6[%c0_10, %c0_11] : memref<8x128xf32, #tpu.memory_space<vmem>>, vector<8x128xf32>
    tpu.vector_store %arg6[%c0_10, %c0_11], %12 {strides = array<i32>} : memref<8x128xf32, #tpu.memory_space<vmem>>, vector<8x128xf32>,
    %c0_i32_12 = arith.constant 0 : i32
    %14 = arith.cmpi eq, %arg1, %c0_i32_12 : i32
    %15 = arith.extui %14 : i1 to i32
    %c0_i32_13 = arith.constant 0 : i32
    %16 = arith.cmpi ne, %15, %c0_i32_13 : i32
    scf.if %16 {
      %c0_14 = arith.constant 0 : index
      %c0_15 = arith.constant 0 : index
      %17 = vector.load %arg6[%c0_14, %c0_15] : memref<8x128xf32, #tpu.memory_space<vmem>>, vector<8x128xf32>
      %c0_16 = arith.constant 0 : index
      %c0_17 = arith.constant 0 : index
      %18 = vector.load %arg5[%c0_16, %c0_17] : memref<8x128xf32, #tpu.memory_space<vmem>>, vector<8x128xf32>
      tpu.vector_store %arg5[%c0_16, %c0_17], %17 {strides = array<i32>} : memref<8x128xf32, #tpu.memory_space<vmem>>, vector<8x128xf32>,
    } else {
    }
    return
  }
  func.func @transform_0(%arg0: i32, %arg1: i32) -> (i32, i32) {
    %c0_i32 = arith.constant 0 : i32
    %c0_i32_0 = arith.constant 0 : i32
    return %arg0, %c0_i32 : i32, i32
  }
  func.func @transform_1(%arg0: i32, %arg1: i32) -> (i32, i32) {
    %c0_i32 = arith.constant 0 : i32
    %c0_i32_0 = arith.constant 0 : i32
    return %c0_i32, %arg1 : i32, i32
  }
  func.func @transform_2(%arg0: i32, %arg1: i32) -> (i32, i32) {
    %c0_i32 = arith.constant 0 : i32
    %c0_i32_0 = arith.constant 0 : i32
    return %arg1, %c0_i32 : i32, i32
  }
  func.func @transform_3(%arg0: i32, %arg1: i32) -> (i32, i32) {
    %c0_i32 = arith.constant 0 : i32
    %c0_i32_0 = arith.constant 0 : i32
    return %arg0, %c0_i32 : i32, i32
  }
}

</mosaic_0001>

<llo_original>
// kernel: tpu_custom_call.1
$region0: #{tpu_custom_call.1}
  #allocation0 [shape = 'u32[]', space=smem, size = 0x4, offset = 0x4, fixed_abs, tag = 'smem constant byte address 0x4 - core index']
  #allocation1 [shape = 'u32[72,128]{1,0:T(1,128)}', space=vmem, size = 0x9000, scoped, tag = 'internal scratch']
  #allocation2 [shape = 'f32[8,128]{1,0:T(8,128)}', space=vmem, size = 0x1000, scoped, tag = 'scratch operand']
  %s0 = inlined_call_operand.hbm [shape: bf16[8,128], index: 0, kind: input, shape index: {}]
  %s1 = inlined_call_operand.hbm [shape: bf16[128,256], index: 1, kind: input, shape index: {}]
  %s2 = inlined_call_operand.hbm [shape: bf16[256,128], index: 2, kind: input, shape index: {}]
  %s3 = inlined_call_operand.hbm [shape: f32[8,128], index: 3, kind: output, shape index: {}]
  %s4 = sld [smem:[#allocation0]]
  $region42: #{tpu_custom_call.1} parent=0
    _
  %s6 = ssub.s32 1, %s4
  %s7 = scalar_select 0, %s6, %s4
  $region1: #{tpu_custom_call.1} parent=0
    #allocation3 [shape = 'u8[2048]{0}', space=vmem, size = 0x800, scoped, tag = 'input window, operand 0, single buffered']
    #allocation4 [shape = 's32[1]{0}', space=sflag, size = 0x4, scoped, tag = 'scoped memory for tpu_custom_call.1']
    #allocation5 [shape = 's32[1]{0}', space=sflag, size = 0x4, scoped, tag = 'scoped memory for tpu_custom_call.1']
    #allocation6 [shape = 'u8[65536]{0}', space=vmem, size = 0x10000, scoped, tag = 'input window, operand 1, single buffered']
    #allocation7 [shape = 's32[1]{0}', space=sflag, size = 0x4, scoped, tag = 'scoped memory for tpu_custom_call.1']
    #allocation8 [shape = 'u8[65536]{0}', space=vmem, size = 0x10000, scoped, tag = 'input window, operand 2, single buffered']
    #allocation9 [shape = 'u8[4096]{0}', space=vmem, size = 0x1000, scoped, tag = 'output window, operand 0, single buffered']
    %8 = vsyncpa [#allocation4], 0
    %9 = vsyncpa [#allocation7], 0
    %10 = vsyncpa [#allocation5], 0
    // Predicated region
    $region2: #{tpu_custom_call.1} parent=1 // pred_check
      _
    $region3: #{tpu_custom_call.1} parent=1 // pred_check_branch
      %12 = sbr.rel (0) target = $region5
    $region4: #{tpu_custom_call.1} parent=1 // pred_region
      %14 = vsyncadd [#allocation4], 0
      %s16 = sshll.u32 %s0, 4
      %s17 = int_to_ptr.hbm [resolvable:$true] %s16
      %s18 = sshll.u32 [#allocation3], 4
      %s19 = int_to_ptr.vmem [resolvable:$true] %s18
      %21 = dma.hbm_to_vmem [thread:$0]  %s17, 64, %s19, [#allocation4]
    $region5: #{tpu_custom_call.1} parent=1 // pred_fallthru
      _
    // Predicated region
    $region6: #{tpu_custom_call.1} parent=1 // pred_check
      _
    $region7: #{tpu_custom_call.1} parent=1 // pred_check_branch
      %23 = sbr.rel (0) target = $region9
    $region8: #{tpu_custom_call.1} parent=1 // pred_region
      %25 = vsyncadd [#allocation7], 0
      %s26 = sshll.u32 %s1, 4
      %s27 = int_to_ptr.hbm [resolvable:$true] %s26
      %s28 = sshll.u32 [#allocation6], 4
      %s29 = int_to_ptr.vmem [resolvable:$true] %s28
      %34 = dma.hbm_to_vmem [thread:$0]  %s27, 2048, %s29, [#allocation7], 128, 128, 8
    $region9: #{tpu_custom_call.1} parent=1 // pred_fallthru
      _
    // Predicated region
    $region10: #{tpu_custom_call.1} parent=1 // pred_check
      _
    $region11: #{tpu_custom_call.1} parent=1 // pred_check_branch
      %36 = sbr.rel (0) target = $region13
    $region12: #{tpu_custom_call.1} parent=1 // pred_region
      %38 = vsyncadd [#allocation7], 0
      %s39 = sshll.u32 %s2, 4
      %s40 = int_to_ptr.hbm [resolvable:$true] %s39
      %s41 = sshll.u32 [#allocation8], 4
      %s42 = int_to_ptr.vmem [resolvable:$true] %s41
      %47 = dma.hbm_to_vmem [thread:$0]  %s40, 2048, %s42, [#allocation7], 64, 64, 4
    $region13: #{tpu_custom_call.1} parent=1 // pred_fallthru
      _
    // Predicated region
    $region14: #{tpu_custom_call.1} parent=1 // pred_check
      _
    $region15: #{tpu_custom_call.1} parent=1 // pred_check_branch
      %49 = sbr.rel (0) target = $region17
    $region16: #{tpu_custom_call.1} parent=1 // pred_region
      %51 = dma.done [#allocation4], 64
    $region17: #{tpu_custom_call.1} parent=1 // pred_fallthru
      _
    // Predicated region
    $region18: #{tpu_custom_call.1} parent=1 // pred_check
      _
    $region19: #{tpu_custom_call.1} parent=1 // pred_check_branch
      %53 = sbr.rel (0) target = $region21
    $region20: #{tpu_custom_call.1} parent=1 // pred_region
      %55 = dma.done [#allocation7], 2048
    $region21: #{tpu_custom_call.1} parent=1 // pred_fallthru
      _
    // Predicated region
    $region22: #{tpu_custom_call.1} parent=1 // pred_check
      _
    $region23: #{tpu_custom_call.1} parent=1 // pred_check_branch
      %57 = sbr.rel (0) target = $region25
    $region24: #{tpu_custom_call.1} parent=1 // pred_region
      %59 = dma.done [#allocation7], 2048
    $region25: #{tpu_custom_call.1} parent=1 // pred_fallthru
      _
    %p60 = scmp.eq.s32.totalorder 0, 0
    // Predicated region
    $region26: #{tpu_custom_call.1} parent=1 // pred_check
      %p61 = pneg %p60
    $region27: #{tpu_custom_call.1} parent=1 // pred_check_branch
      %63 = sbr.rel (%p61) target = $region29
    $region28: #{tpu_custom_call.1} parent=1 // pred_region
      %64 = vst [vmem:[#allocation2] sm:$0xff] 0.0
    $region29: #{tpu_custom_call.1} parent=1 // pred_fallthru
      _
    %v65 = vld [vmem:[#allocation3] sm:$0xf]
    %v66 = vld [vmem:[#allocation6] sm:$0xff]
    %v67 = vld [vmem:[#allocation6 + $0x8] sm:$0xff]
    %v68 = vld [vmem:[#allocation6 + $0x10] sm:$0xff]
    %v69 = vld [vmem:[#allocation6 + $0x18] sm:$0xff]
    %v70 = vld [vmem:[#allocation6 + $0x20] sm:$0xff]
    %v71 = vld [vmem:[#allocation6 + $0x28] sm:$0xff]
    %v72 = vld [vmem:[#allocation6 + $0x30] sm:$0xff]
    %v73 = vld [vmem:[#allocation6 + $0x38] sm:$0xff]
    %v74 = vld [vmem:[#allocation6 + $0x40] sm:$0xff]
    %v75 = vld [vmem:[#allocation6 + $0x48] sm:$0xff]
    %v76 = vld [vmem:[#allocation6 + $0x50] sm:$0xff]
    %v77 = vld [vmem:[#allocation6 + $0x58] sm:$0xff]
    %v78 = vld [vmem:[#allocation6 + $0x60] sm:$0xff]
    %v79 = vld [vmem:[#allocation6 + $0x68] sm:$0xff]
    %v80 = vld [vmem:[#allocation6 + $0x70] sm:$0xff]
    %v81 = vld [vmem:[#allocation6 + $0x78] sm:$0xff]
    %v98 = vunpack.c.l.b16 %v66
    %v99 = vunpack.c.h.b16 %v66
    %v100 = vunpack.c.l.b16 %v67
    %v101 = vunpack.c.h.b16 %v67
    %v102 = vunpack.c.l.b16 %v68
    %v103 = vunpack.c.h.b16 %v68
    %v104 = vunpack.c.l.b16 %v69
    %v105 = vunpack.c.h.b16 %v69
    %v106 = vunpack.c.l.b16 %v70
    %v107 = vunpack.c.h.b16 %v70
    %v108 = vunpack.c.l.b16 %v71
    %v109 = vunpack.c.h.b16 %v71
    %v110 = vunpack.c.l.b16 %v72
    %v111 = vunpack.c.h.b16 %v72
    %v112 = vunpack.c.l.b16 %v73
    %v113 = vunpack.c.h.b16 %v73
    %v114 = vunpack.c.l.b16 %v74
    %v115 = vunpack.c.h.b16 %v74
    %v116 = vunpack.c.l.b16 %v75
    %v117 = vunpack.c.h.b16 %v75
    %v118 = vunpack.c.l.b16 %v76
    %v119 = vunpack.c.h.b16 %v76
    %v120 = vunpack.c.l.b16 %v77
    %v121 = vunpack.c.h.b16 %v77
    %v122 = vunpack.c.l.b16 %v78
    %v123 = vunpack.c.h.b16 %v78
    %v124 = vunpack.c.l.b16 %v79
    %v125 = vunpack.c.h.b16 %v79
    %v126 = vunpack.c.l.b16 %v80
    %v127 = vunpack.c.h.b16 %v80
    %v128 = vunpack.c.l.b16 %v81
    %v129 = vunpack.c.h.b16 %v81
    %v130 = vpack.c.b16 %v100, %v98
    %v131 = vpack.c.b16 %v101, %v99
    %v132 = vpack.c.b16 %v104, %v102
    %v133 = vpack.c.b16 %v105, %v103
    %v134 = vpack.c.b16 %v108, %v106
    %v135 = vpack.c.b16 %v109, %v107
    %v136 = vpack.c.b16 %v112, %v110
    %v137 = vpack.c.b16 %v113, %v111
    %v138 = vpack.c.b16 %v116, %v114
    %v139 = vpack.c.b16 %v117, %v115
    %v140 = vpack.c.b16 %v120, %v118
    %v141 = vpack.c.b16 %v121, %v119
    %v142 = vpack.c.b16 %v124, %v122
    %v143 = vpack.c.b16 %v125, %v123
    %v144 = vpack.c.b16 %v128, %v126
    %v145 = vpack.c.b16 %v129, %v127
    %162 = vmatpush.bf16.msra.mxu0 %v144
    %163 = vmatpush.bf16.msra.mxu0 %v142
    %164 = vmatpush.bf16.msra.mxu0 %v140
    %165 = vmatpush.bf16.msra.mxu0 %v138
    %166 = vmatpush.bf16.msra.mxu0 %v136
    %167 = vmatpush.bf16.msra.mxu0 %v134
    %168 = vmatpush.bf16.msra.mxu0 %v132
    %169 = vmatpush.bf16.msra.mxu0 %v130
    %170 = vmatmul.bf16.gmra.mxu0 %v65
    %v171 = vpop.f32.mrf.mxu0
    %v172 = vadd.f32 0.0, %v171
    %v173 = vpop.f32.mrf.mxu0
    %174 = vdwg.mxu0
    %175 = vmatpush.bf16.msra.mxu0 %v145
    %176 = vmatpush.bf16.msra.mxu0 %v143
    %177 = vmatpush.bf16.msra.mxu0 %v141
    %178 = vmatpush.bf16.msra.mxu0 %v139
    %179 = vmatpush.bf16.msra.mxu0 %v137
    %180 = vmatpush.bf16.msra.mxu0 %v135
    %181 = vmatpush.bf16.msra.mxu0 %v133
    %182 = vmatpush.bf16.msra.mxu0 %v131
    %183 = vmatmul.bf16.gmra.mxu0 %v65
    %v184 = vpop.f32.mrf.mxu0
    %v185 = vadd.f32 0.0, %v184
    %v186 = vpop.f32.mrf.mxu0
    %187 = vdwg.mxu0
    %v188 = vmax.f32 %v172, 0.0
    %v189 = vmax.f32 %v185, 0.0
    %v190 = vld [vmem:[#allocation2] sm:$0xff]
    %v191 = vpack.c.bf16 %v188, %v188
    %v192 = vpack.c.bf16 %v189, %v189
    %v193 = vld [vmem:[#allocation8] sm:$0xf]
    %v194 = vld [vmem:[#allocation8 + $0x4] sm:$0xf]
    %v195 = vld [vmem:[#allocation8 + $0x8] sm:$0xf]
    %v196 = vld [vmem:[#allocation8 + $0xc] sm:$0xf]
    %v197 = vld [vmem:[#allocation8 + $0x10] sm:$0xf]
    %v198 = vld [vmem:[#allocation8 + $0x14] sm:$0xf]
    %v199 = vld [vmem:[#allocation8 + $0x18] sm:$0xf]
    %v200 = vld [vmem:[#allocation8 + $0x1c] sm:$0xf]
    %v201 = vld [vmem:[#allocation8 + $0x20] sm:$0xf]
    %v202 = vld [vmem:[#allocation8 + $0x24] sm:$0xf]
    %v203 = vld [vmem:[#allocation8 + $0x28] sm:$0xf]
    %v204 = vld [vmem:[#allocation8 + $0x2c] sm:$0xf]
    %v205 = vld [vmem:[#allocation8 + $0x30] sm:$0xf]
    %v206 = vld [vmem:[#allocation8 + $0x34] sm:$0xf]
    %v207 = vld [vmem:[#allocation8 + $0x38] sm:$0xf]
    %v208 = vld [vmem:[#allocation8 + $0x3c] sm:$0xf]
    %v209 = vld [vmem:[#allocation8 + $0x40] sm:$0xf]
    %v210 = vld [vmem:[#allocation8 + $0x44] sm:$0xf]
    %v211 = vld [vmem:[#allocation8 + $0x48] sm:$0xf]
    %v212 = vld [vmem:[#allocation8 + $0x4c] sm:$0xf]
    %v213 = vld [vmem:[#allocation8 + $0x50] sm:$0xf]
    %v214 = vld [vmem:[#allocation8 + $0x54] sm:$0xf]
    %v215 = vld [vmem:[#allocation8 + $0x58] sm:$0xf]
    %v216 = vld [vmem:[#allocation8 + $0x5c] sm:$0xf]
    %v217 = vld [vmem:[#allocation8 + $0x60] sm:$0xf]
    %v218 = vld [vmem:[#allocation8 + $0x64] sm:$0xf]
    %v219 = vld [vmem:[#allocation8 + $0x68] sm:$0xf]
    %v220 = vld [vmem:[#allocation8 + $0x6c] sm:$0xf]
    %v221 = vld [vmem:[#allocation8 + $0x70] sm:$0xf]
    %v222 = vld [vmem:[#allocation8 + $0x74] sm:$0xf]
    %v223 = vld [vmem:[#allocation8 + $0x78] sm:$0xf]
    %v224 = vld [vmem:[#allocation8 + $0x7c] sm:$0xf]
    %v257 = vunpack.c.l.b16 %v193
    %v258 = vunpack.c.l.b16 %v194
    %v259 = vunpack.c.l.b16 %v195
    %v260 = vunpack.c.l.b16 %v196
    %v261 = vunpack.c.l.b16 %v197
    %v262 = vunpack.c.l.b16 %v198
    %v263 = vunpack.c.l.b16 %v199
    %v264 = vunpack.c.l.b16 %v200
    %v265 = vunpack.c.l.b16 %v201
    %v266 = vunpack.c.l.b16 %v202
    %v267 = vunpack.c.l.b16 %v203
    %v268 = vunpack.c.l.b16 %v204
    %v269 = vunpack.c.l.b16 %v205
    %v270 = vunpack.c.l.b16 %v206
    %v271 = vunpack.c.l.b16 %v207
    %v272 = vunpack.c.l.b16 %v208
    %v273 = vunpack.c.l.b16 %v209
    %v274 = vunpack.c.l.b16 %v210
    %v275 = vunpack.c.l.b16 %v211
    %v276 = vunpack.c.l.b16 %v212
    %v277 = vunpack.c.l.b16 %v213
    %v278 = vunpack.c.l.b16 %v214
    %v279 = vunpack.c.l.b16 %v215
    %v280 = vunpack.c.l.b16 %v216
    %v281 = vunpack.c.l.b16 %v217
    %v282 = vunpack.c.l.b16 %v218
    %v283 = vunpack.c.l.b16 %v219
    %v284 = vunpack.c.l.b16 %v220
    %v285 = vunpack.c.l.b16 %v221
    %v286 = vunpack.c.l.b16 %v222
    %v287 = vunpack.c.l.b16 %v223
    %v288 = vunpack.c.l.b16 %v224
    %v289 = vpack.c.b16 %v258, %v257
    %v290 = vpack.c.b16 %v260, %v259
    %v291 = vpack.c.b16 %v262, %v261
    %v292 = vpack.c.b16 %v264, %v263
    %v293 = vpack.c.b16 %v266, %v265
    %v294 = vpack.c.b16 %v268, %v267
    %v295 = vpack.c.b16 %v270, %v269
    %v296 = vpack.c.b16 %v272, %v271
    %v297 = vpack.c.b16 %v274, %v273
    %v298 = vpack.c.b16 %v276, %v275
    %v299 = vpack.c.b16 %v278, %v277
    %v300 = vpack.c.b16 %v280, %v279
    %v301 = vpack.c.b16 %v282, %v281
    %v302 = vpack.c.b16 %v284, %v283
    %v303 = vpack.c.b16 %v286, %v285
    %v304 = vpack.c.b16 %v288, %v287
    %321 = vmatpush.bf16.msra.mxu0 %v296
    %322 = vmatpush.bf16.msra.mxu0 %v295
    %323 = vmatpush.bf16.msra.mxu0 %v294
    %324 = vmatpush.bf16.msra.mxu0 %v293
    %325 = vmatpush.bf16.msra.mxu0 %v292
    %326 = vmatpush.bf16.msra.mxu0 %v291
    %327 = vmatpush.bf16.msra.mxu0 %v290
    %328 = vmatpush.bf16.msra.mxu0 %v289
    %329 = vmatmul.bf16.gmra.mxu0 %v191
    %v330 = vpop.f32.mrf.mxu0
    %v331 = vadd.f32 0.0, %v330
    %v332 = vpop.f32.mrf.mxu0
    %333 = vdwg.mxu0
    %334 = vmatpush.bf16.msra.mxu0 %v304
    %335 = vmatpush.bf16.msra.mxu0 %v303
    %336 = vmatpush.bf16.msra.mxu0 %v302
    %337 = vmatpush.bf16.msra.mxu0 %v301
    %338 = vmatpush.bf16.msra.mxu0 %v300
    %339 = vmatpush.bf16.msra.mxu0 %v299
    %340 = vmatpush.bf16.msra.mxu0 %v298
    %341 = vmatpush.bf16.msra.mxu0 %v297
    %342 = vmatmul.bf16.gmra.mxu0 %v192
    %v343 = vpop.f32.mrf.mxu0
    %v344 = vadd.f32 %v331, %v343
    %v345 = vpop.f32.mrf.mxu0
    %346 = vdwg.mxu0
    %v347 = vadd.f32 %v190, %v344
    %348 = vst [vmem:[#allocation2] sm:$0xff] %v347
    // Predicated region
    $region30: #{tpu_custom_call.1} parent=1 // pred_check
      %p349 = pneg %p60
    $region31: #{tpu_custom_call.1} parent=1 // pred_check_branch
      %351 = sbr.rel (%p349) target = $region33
    $region32: #{tpu_custom_call.1} parent=1 // pred_region
      %v352 = vld [vmem:[#allocation2] sm:$0xff]
      %353 = vst [vmem:[#allocation9] sm:$0xff] %v352
    $region33: #{tpu_custom_call.1} parent=1 // pred_fallthru
      _
    // Predicated region
    $region34: #{tpu_custom_call.1} parent=1 // pred_check
      _
    $region35: #{tpu_custom_call.1} parent=1 // pred_check_branch
      %355 = sbr.rel (0) target = $region37
    $region36: #{tpu_custom_call.1} parent=1 // pred_region
      %357 = vsyncadd [#allocation5], 0
      %s359 = sshll.u32 [#allocation9], 4
      %s360 = int_to_ptr.vmem [resolvable:$true] %s359
      %s361 = sshll.u32 %s3, 4
      %s362 = int_to_ptr.hbm [resolvable:$true] %s361
      %364 = dma.vmem_to_hbm [thread:$0]  %s360, 128, %s362, [#allocation5]
    $region37: #{tpu_custom_call.1} parent=1 // pred_fallthru
      _
    // Predicated region
    $region38: #{tpu_custom_call.1} parent=1 // pred_check
      _
    $region39: #{tpu_custom_call.1} parent=1 // pred_check_branch
      %366 = sbr.rel (0) target = $region41
    $region40: #{tpu_custom_call.1} parent=1 // pred_region
      %368 = dma.done [#allocation5], 128
    $region41: #{tpu_custom_call.1} parent=1 // pred_fallthru
      _
    %369 = vsyncpa [#allocation4], 1
    %370 = vsyncpa [#allocation7], 1
    %371 = vsyncpa [#allocation5], 1

</llo_original>
